<compile_context>
chip_gen: v7x
topology: tpu7x:2x2x1
jax: 0.10.0
libtpu: 0.0.40
codegen_flags: <defaults>
</compile_context>

<pallas_src>
import functools

import jax
import jax.numpy as jnp
from jax.experimental import pallas as pl
from jax.experimental.pallas import tpu as pltpu


# ----------------------------------------------------------------------------
# Kernel
# ----------------------------------------------------------------------------
def _make_decode_block_kernel(has_skip):
    """Fused DecodeBlock kernel: one batch block per grid step, channels-last."""

    def kernel(*refs):
        if has_skip:
            x_ref, sk_ref, w1_ref, w2_ref, sh1_ref, sh2_ref, o_ref = refs
        else:
            x_ref, w1_ref, w2_ref, sh1_ref, sh2_ref, o_ref = refs

        b_blk, L, _ = x_ref.shape
        cdt = w1_ref.dtype
        f32 = jnp.float32
        rows = b_blk * L

        def prev(v):   # out[i] = v[i-1], out[0] = 0     (per (L, C) tile)
            return jnp.concatenate([jnp.zeros_like(v[:1]), v[:-1]], axis=0)

        def nxt(v):    # out[i] = v[i+1], out[L-1] = 0
            return jnp.concatenate([v[1:], jnp.zeros_like(v[:1])], axis=0)

        # ---- layer 1: tap-packed operand, even/odd streams stacked along M -------
        #   upsampled input u: u[2i] = [x[i], skip_even[i]], u[2i+1] = [x[i], skip_odd[i]]
        #   even output 2i  : taps u[2i-1], u[2i],  u[2i+1]
        #   odd  output 2i+1: taps u[2i],  u[2i+1], u[2i+2]
        even1, odd1 = [], []
        for b in range(b_blk):
            xb = x_ref[b].astype(cdt)                       # (L, Cin)
            pxb, nxb = prev(xb), nxt(xb)
            if has_skip:
                seb = sk_ref[b, 0].astype(cdt)              # skip at even positions
                sob = sk_ref[b, 1].astype(cdt)              # skip at odd positions
                even1.append(jnp.concatenate(
                    [pxb, prev(sob), xb, seb, xb, sob], axis=-1))
                odd1.append(jnp.concatenate(
                    [xb, seb, xb, sob, nxb, nxt(seb)], axis=-1))
            else:
                even1.append(jnp.concatenate([pxb, xb, xb], axis=-1))
                odd1.append(jnp.concatenate([xb, xb, nxb], axis=-1))
        a1 = jnp.concatenate(even1 + odd1, axis=0)          # (2*B*L, 3*(Cin+Cskip))

        h = jnp.dot(a1, w1_ref[...], preferred_element_type=f32)
        h = jnp.maximum(h + sh1_ref[...], 0.0)              # bias + BN folded shift
        hc = h.astype(cdt)                                  # stays on-chip (no HBM trip)

        # ---- layer 2: same trick on the hidden streams ----------------------------
        #   y[2i]   taps: h[2i-1]=h_o[i-1], h[2i]=h_e[i], h[2i+1]=h_o[i]
        #   y[2i+1] taps: h[2i]=h_e[i],     h[2i+1]=h_o[i], h[2i+2]=h_e[i+1]
        even2, odd2 = [], []
        for b in range(b_blk):
            he = hc[b * L:(b + 1) * L]
            ho = hc[rows + b * L:rows + (b + 1) * L]
            even2.append(jnp.concatenate([prev(ho), he, ho], axis=-1))
            odd2.append(jnp.concatenate([he, ho, nxt(he)], axis=-1))
        a2 = jnp.concatenate(even2 + odd2, axis=0)          # (2*B*L, 3*Cmid)

        y = jnp.dot(a2, w2_ref[...], preferred_element_type=f32)
        y = jnp.maximum(y + sh2_ref[...], 0.0).astype(o_ref.dtype)

        for b in range(b_blk):
            o_ref[b, 0] = y[b * L:(b + 1) * L]               # even positions
            o_ref[b, 1] = y[rows + b * L:rows + (b + 1) * L]  # odd positions

    return kernel


# ----------------------------------------------------------------------------
# Parameter folding / packing (done ONCE, outside the jitted forward)
# ----------------------------------------------------------------------------
def _fold_conv_bn(p, eps=1e-5):
    """Fold Conv1d bias + eval-mode BatchNorm1d into conv weights + per-channel shift."""
    scale = p["gamma"] / jnp.sqrt(p["var"] + eps)                         # (Cout,)
    w_kio = jnp.transpose(p["weight"], (2, 1, 0)) * scale[None, None, :]  # (3, Cin, Cout)
    shift = (p["bias"] - p["mean"]) * scale + p["beta"]                   # (Cout,)
    return w_kio, shift


def pack_decode_block_params(p1, p2, in_channels, skip_channels,
                             compute_dtype=jnp.bfloat16, eps=1e-5):
    """Packed, tap-major 2-D weights (K on the contraction axis) + f32 shifts."""
    w1, sh1 = _fold_conv_bn(p1, eps)            # (3, Cin+Cskip, Cmid), (Cmid,)
    w2, sh2 = _fold_conv_bn(p2, eps)            # (3, Cmid, Cout),      (Cout,)
    cin_tot = in_channels + skip_channels
    assert w1.shape[1] == cin_tot, (w1.shape, cin_tot)
    cmid = w1.shape[2]
    assert w2.shape[1] == cmid
    return dict(
        w1=w1.reshape(3 * cin_tot, cmid).astype(compute_dtype),
        w2=w2.reshape(3 * cmid, -1).astype(compute_dtype),
        sh1=sh1.reshape(1, -1).astype(jnp.float32),
        sh2=sh2.reshape(1, -1).astype(jnp.float32),
    )


def init_conv_bn_params(key, in_ch, out_ch):
    """Deterministic synthetic params for Conv1d(k=3, bias=True) + BatchNorm1d (eval)."""
    k1, k2, k3, k4 = jax.random.split(key, 4)
    return dict(
        weight=jax.random.normal(k1, (out_ch, in_ch, 3), jnp.float32) * 0.1,
        bias=jax.random.normal(k2, (out_ch,), jnp.float32) * 0.1,
        gamma=1.0 + 0.05 * jax.random.normal(k3, (out_ch,), jnp.float32),
        beta=0.05 * jax.random.normal(k4, (out_ch,), jnp.float32),
        mean=jnp.zeros((out_ch,), jnp.float32),
        var=jnp.ones((out_ch,), jnp.float32),
    )


# ----------------------------------------------------------------------------
# Forward pass
# ----------------------------------------------------------------------------
def _pick_batch_block(n, l):
    """Largest divisor of n that keeps M reasonable but leaves >=2 grid steps (megacore)."""
    target = max(1, 128 // max(1, l))
    b = 1
    for d in range(1, n + 1):
        if n % d == 0 and d <= target:
            b = d
    if n // b < 2:
        for d in range(b - 1, 0, -1):
            if n % d == 0 and n // d >= 2:
                b = d
                break
    return b


def decode_block_forward_nlc(x_nlc, skip_eo, params):
    """Channels-last core: x (N, L, Cin), skip_eo (N, 2, L, Cskip) or None
    -> (N, 2, L, Cout) with [:, 0] = even and [:, 1] = odd output positions."""
    N, L, Cin = x_nlc.shape
    w1p, w2p, sh1, sh2 = params["w1"], params["w2"], params["sh1"], params["sh2"]
    cdt = w1p.dtype
    Cmid = w1p.shape[1]
    Cout = w2p.shape[1]
    has_skip = skip_eo is not None
    Cskip = skip_eo.shape[3] if has_skip else 0
    assert w1p.shape[0] == 3 * (Cin + Cskip), (w1p.shape, Cin, Cskip)
    assert w2p.shape[0] == 3 * Cmid

    b_blk = _pick_batch_block(N, L)
    grid = (N // b_blk,)

    inputs = [x_nlc]
    in_specs = [pl.BlockSpec((b_blk, L, Cin), lambda n: (n, 0, 0))]
    if has_skip:
        inputs.append(skip_eo)
        in_specs.append(pl.BlockSpec((b_blk, 2, L, Cskip), lambda n: (n, 0, 0, 0)))
    inputs += [w1p, w2p, sh1, sh2]
    in_specs += [pl.BlockSpec(w1p.shape, lambda n: (0, 0)),
                 pl.BlockSpec(w2p.shape, lambda n: (0, 0)),
                 pl.BlockSpec(sh1.shape, lambda n: (0, 0)),
                 pl.BlockSpec(sh2.shape, lambda n: (0, 0))]

    # Rough per-step VMEM footprint (double-buffered IO + resident weights + operands),
    # with generous headroom; clamped well under v7x's 64 MiB per-core VMEM.
    isz_in = jnp.dtype(x_nlc.dtype).itemsize
    isz_c = jnp.dtype(cdt).itemsize
    k1 = 3 * (Cin + Cskip)
    rows2 = 2 * b_blk * L
    est = (2 * b_blk * L * Cin * isz_in
           + 2 * b_blk * 2 * L * Cskip * isz_c
           + 2 * b_blk * 2 * L * Cout * isz_c
           + (k1 * Cmid + 3 * Cmid * Cout) * isz_c + (Cmid + Cout) * 4
           + rows2 * (k1 + 3 * Cmid) * isz_c
           + rows2 * (Cmid + Cout) * 4)
    vmem_limit = int(min(max(6 * est, 32 * 1024 * 1024), 48 * 1024 * 1024))

    return pl.pallas_call(
        _make_decode_block_kernel(has_skip),
        out_shape=jax.ShapeDtypeStruct((N, 2, L, Cout), cdt),
        grid_spec=pltpu.PrefetchScalarGridSpec(
            num_scalar_prefetch=0,
            grid=grid,
            in_specs=in_specs,
            out_specs=pl.BlockSpec((b_blk, 2, L, Cout), lambda n: (n, 0, 0, 0))),
        compiler_params=pltpu.CompilerParams(
            dimension_semantics=("parallel",),
            vmem_limit_bytes=vmem_limit),
    )(*inputs)


@jax.jit
def decode_block_forward(x_ncl, skip_ncl, params):
    """DecodeBlock.forward with PyTorch layouts: x (N,Cin,L), skip (N,Cskip,2L) -> (N,Cout,2L)."""
    N, Cin, L = x_ncl.shape
    cdt = params["w1"].dtype
    # Layout glue only (see TODO at the top): channels-last + even/odd de-interleave
    # of skip on the way in, even/odd re-interleave + NCL on the way out.
    x_nlc = jnp.transpose(x_ncl, (0, 2, 1)).astype(cdt)
    skip_eo = None
    if skip_ncl is not None:
        Cskip = skip_ncl.shape[1]
        assert skip_ncl.shape[2] == 2 * L
        skip_eo = jnp.transpose(skip_ncl.reshape(N, Cskip, L, 2),
                                (0, 3, 2, 1)).astype(cdt)       # (N, 2, L, Cskip)
    out_eo = decode_block_forward_nlc(x_nlc, skip_eo, params)    # (N, 2, L, Cout)
    Cout = out_eo.shape[-1]
    return jnp.transpose(out_eo, (0, 3, 2, 1)).reshape(N, Cout, 2 * L)


# ----------------------------------------------------------------------------
# Pure-JAX reference (lax conv) for the correctness check
# ----------------------------------------------------------------------------
def _reference_forward(x_ncl, skip_ncl, p1, p2, compute_dtype=jnp.bfloat16):
    w1, sh1 = _fold_conv_bn(p1)
    w2, sh2 = _fold_conv_bn(p2)

    def cast(a):
        return a.astype(compute_dtype).astype(jnp.float32)

    def conv_shift_relu(u_nlc, w_kio, sh):
        y = jax.lax.conv_general_dilated(
            u_nlc, cast(w_kio), window_strides=(1,), padding=((1, 1),),
            dimension_numbers=("NWC", "WIO", "NWC"))
        return jnp.maximum(y + sh.reshape(1, 1, -1), 0.0)

    x_up = jnp.repeat(cast(x_ncl), 2, axis=2)
    u = (jnp.concatenate([x_up, cast(skip_ncl)], axis=1)
         if skip_ncl is not None else x_up)
    u = jnp.transpose(u, (0, 2, 1))
    h = cast(conv_shift_relu(u, w1, sh1))    # mirror the kernel's compute-dtype carry
    y = conv_shift_relu(h, w2, sh2)
    return jnp.transpose(y, (0, 2, 1))


if __name__ == "__main__":
    # Small shapes: batch=2, in_channels=4, skip_channels=4, out_channels=8, seq=8.
    N, Cin, Cskip, Cout, L = 2, 4, 4, 8, 8

    root = jax.random.PRNGKey(0)
    kx, ks, kp1, kp2 = jax.random.split(root, 4)

    x = jax.random.normal(kx, (N, Cin, L), jnp.float32)             # PyTorch NCL
    skip = jax.random.normal(ks, (N, Cskip, 2 * L), jnp.float32)    # matches upsampled length

    p1 = init_conv_bn_params(kp1, Cin + Cskip, Cout)                # conv1
    p2 = init_conv_bn_params(kp2, Cout, Cout)                       # conv2

    # --- f32 params -> f32 carry & output: tight check vs the lax reference ----
    prm32 = pack_decode_block_params(p1, p2, Cin, Cskip, compute_dtype=jnp.float32)
    out32 = jax.block_until_ready(decode_block_forward(x, skip, prm32))
    ref32 = _reference_forward(x, skip, p1, p2, compute_dtype=jnp.float32)
    assert out32.shape == (N, Cout, 2 * L), out32.shape
    assert out32.dtype == jnp.float32
    assert jnp.allclose(out32, ref32, atol=3e-5, rtol=3e-5), "f32 mismatch vs reference"

    # --- bf16 params -> bf16 carry & output (default fast path) ----------------
    prm16 = pack_decode_block_params(p1, p2, Cin, Cskip, compute_dtype=jnp.bfloat16)
    out16 = jax.block_until_ready(decode_block_forward(x, skip, prm16))
    ref16 = _reference_forward(x, skip, p1, p2, compute_dtype=jnp.bfloat16)
    assert out16.shape == (N, Cout, 2 * L), out16.shape
    assert out16.dtype == jnp.bfloat16
    assert jnp.allclose(out16.astype(jnp.float32), ref16, atol=3e-2, rtol=3e-2), \
        "bf16 mismatch vs reference"

    print("KERNEL_OK")
</pallas_src>

<mosaic_0001>
module attributes {stable_mosaic.version = 11 : i64} {
  func.func @kernel(%arg0: i32, %arg1: memref<1x8x4xf32, #tpu.memory_space<vmem>>, %arg2: memref<1x2x8x4xf32, #tpu.memory_space<vmem>>, %arg3: memref<24x8xf32, #tpu.memory_space<vmem>>, %arg4: memref<24x8xf32, #tpu.memory_space<vmem>>, %arg5: memref<1x8xf32, #tpu.memory_space<vmem>>, %arg6: memref<1x8xf32, #tpu.memory_space<vmem>>, %arg7: memref<1x2x8x8xf32, #tpu.memory_space<vmem>>) attributes {dimension_semantics = [#tpu.dimension_semantics<parallel>], iteration_bounds = array<i64: 2>, scalar_prefetch = 0 : i64, scratch_operands = 0 : i64, tpu.core_type = #tpu.core_type<tc>, window_params = [{transform_indices = @transform_0, window_bounds = array<i64: 1, 8, 4>}, {transform_indices = @transform_1, window_bounds = array<i64: 1, 2, 8, 4>}, {pipeline_mode = #tpu.pipeline_mode<synchronous>, transform_indices = @transform_2, window_bounds = array<i64: 24, 8>}, {pipeline_mode = #tpu.pipeline_mode<synchronous>, transform_indices = @transform_3, window_bounds = array<i64: 24, 8>}, {pipeline_mode = #tpu.pipeline_mode<synchronous>, transform_indices = @transform_4, window_bounds = array<i64: 1, 8>}, {pipeline_mode = #tpu.pipeline_mode<synchronous>, transform_indices = @transform_5, window_bounds = array<i64: 1, 8>}, {transform_indices = @transform_6, window_bounds = array<i64: 1, 2, 8, 8>}]} {
    %c0 = arith.constant 0 : index
    %c0_0 = arith.constant 0 : index
    %c0_1 = arith.constant 0 : index
    %0 = vector.load %arg1[%c0, %c0_0, %c0_1] : memref<1x8x4xf32, #tpu.memory_space<vmem>>, vector<1x8x4xf32>
    %1 = vector.shape_cast %0 : vector<1x8x4xf32> to vector<8x4xf32>
    %cst = arith.constant 0.000000e+00 : f32
    %2 = vector.broadcast %cst : f32 to vector<1x4xf32>
    %3 = vector.extract_strided_slice %1 {offsets = [0, 0], sizes = [7, 4], strides = [1, 1]} : vector<8x4xf32> to vector<7x4xf32>
    %4 = tpu.concatenate %2, %3 in 0 : vector<1x4xf32>, vector<7x4xf32> -> vector<8x4xf32>
    %5 = vector.extract_strided_slice %1 {offsets = [1, 0], sizes = [7, 4], strides = [1, 1]} : vector<8x4xf32> to vector<7x4xf32>
    %cst_2 = arith.constant 0.000000e+00 : f32
    %6 = vector.broadcast %cst_2 : f32 to vector<1x4xf32>
    %7 = tpu.concatenate %5, %6 in 0 : vector<7x4xf32>, vector<1x4xf32> -> vector<8x4xf32>
    %c0_3 = arith.constant 0 : index
    %c0_4 = arith.constant 0 : index
    %c0_5 = arith.constant 0 : index
    %c0_6 = arith.constant 0 : index
    %8 = vector.load %arg2[%c0_3, %c0_4, %c0_5, %c0_6] : memref<1x2x8x4xf32, #tpu.memory_space<vmem>>, vector<1x1x8x4xf32>
    %9 = vector.shape_cast %8 : vector<1x1x8x4xf32> to vector<8x4xf32>
    %c0_7 = arith.constant 0 : index
    %c1 = arith.constant 1 : index
    %c0_8 = arith.constant 0 : index
    %c0_9 = arith.constant 0 : index
    %10 = vector.load %arg2[%c0_7, %c1, %c0_8, %c0_9] : memref<1x2x8x4xf32, #tpu.memory_space<vmem>>, vector<1x1x8x4xf32>
    %11 = vector.shape_cast %10 : vector<1x1x8x4xf32> to vector<8x4xf32>
    %cst_10 = arith.constant 0.000000e+00 : f32
    %12 = vector.broadcast %cst_10 : f32 to vector<1x4xf32>
    %13 = vector.extract_strided_slice %11 {offsets = [0, 0], sizes = [7, 4], strides = [1, 1]} : vector<8x4xf32> to vector<7x4xf32>
    %14 = tpu.concatenate %12, %13 in 0 : vector<1x4xf32>, vector<7x4xf32> -> vector<8x4xf32>
    %15 = tpu.concatenate %4, %14, %1, %9, %1, %11 in 1 : vector<8x4xf32>, vector<8x4xf32>, vector<8x4xf32>, vector<8x4xf32>, vector<8x4xf32>, vector<8x4xf32> -> vector<8x24xf32>
    %16 = vector.extract_strided_slice %9 {offsets = [1, 0], sizes = [7, 4], strides = [1, 1]} : vector<8x4xf32> to vector<7x4xf32>
    %cst_11 = arith.constant 0.000000e+00 : f32
    %17 = vector.broadcast %cst_11 : f32 to vector<1x4xf32>
    %18 = tpu.concatenate %16, %17 in 0 : vector<7x4xf32>, vector<1x4xf32> -> vector<8x4xf32>
    %19 = tpu.concatenate %1, %9, %1, %11, %7, %18 in 1 : vector<8x4xf32>, vector<8x4xf32>, vector<8x4xf32>, vector<8x4xf32>, vector<8x4xf32>, vector<8x4xf32> -> vector<8x24xf32>
    %20 = tpu.concatenate %15, %19 in 0 : vector<8x24xf32>, vector<8x24xf32> -> vector<16x24xf32>
    %c0_12 = arith.constant 0 : index
    %c0_13 = arith.constant 0 : index
    %21 = vector.load %arg3[%c0_12, %c0_13] : memref<24x8xf32, #tpu.memory_space<vmem>>, vector<24x8xf32>
    %cst_14 = arith.constant dense<0.000000e+00> : vector<16x8xf32>
    %22 = tpu.matmul %20, %21, %cst_14 {dimension_numbers = #tpu.dot_dimension_numbers<[1], [0], [0], [1], [0, 0, 1, 1], [], []>} : vector<16x24xf32>, vector<24x8xf32>, vector<16x8xf32> -> vector<16x8xf32>
    %c0_15 = arith.constant 0 : index
    %c0_16 = arith.constant 0 : index
    %23 = vector.load %arg5[%c0_15, %c0_16] : memref<1x8xf32, #tpu.memory_space<vmem>>, vector<1x8xf32>
    %24 = vector.broadcast %23 : vector<1x8xf32> to vector<16x8xf32>
    %25 = arith.addf %22, %24 : vector<16x8xf32>
    %cst_17 = arith.constant 0.000000e+00 : f32
    %26 = vector.broadcast %cst_17 : f32 to vector<16x8xf32>
    %27 = arith.maximumf %25, %26 : vector<16x8xf32>
    %28 = vector.extract_strided_slice %27 {offsets = [0, 0], sizes = [8, 8], strides = [1, 1]} : vector<16x8xf32> to vector<8x8xf32>
    %29 = vector.extract_strided_slice %27 {offsets = [8, 0], sizes = [8, 8], strides = [1, 1]} : vector<16x8xf32> to vector<8x8xf32>
    %cst_18 = arith.constant 0.000000e+00 : f32
    %30 = vector.broadcast %cst_18 : f32 to vector<1x8xf32>
    %31 = vector.extract_strided_slice %29 {offsets = [0, 0], sizes = [7, 8], strides = [1, 1]} : vector<8x8xf32> to vector<7x8xf32>
    %32 = tpu.concatenate %30, %31 in 0 : vector<1x8xf32>, vector<7x8xf32> -> vector<8x8xf32>
    %33 = tpu.concatenate %32, %28, %29 in 1 : vector<8x8xf32>, vector<8x8xf32>, vector<8x8xf32> -> vector<8x24xf32>
    %34 = vector.extract_strided_slice %28 {offsets = [1, 0], sizes = [7, 8], strides = [1, 1]} : vector<8x8xf32> to vector<7x8xf32>
    %cst_19 = arith.constant 0.000000e+00 : f32
    %35 = vector.broadcast %cst_19 : f32 to vector<1x8xf32>
    %36 = tpu.concatenate %34, %35 in 0 : vector<7x8xf32>, vector<1x8xf32> -> vector<8x8xf32>
    %37 = tpu.concatenate %28, %29, %36 in 1 : vector<8x8xf32>, vector<8x8xf32>, vector<8x8xf32> -> vector<8x24xf32>
    %38 = tpu.concatenate %33, %37 in 0 : vector<8x24xf32>, vector<8x24xf32> -> vector<16x24xf32>
    %c0_20 = arith.constant 0 : index
    %c0_21 = arith.constant 0 : index
    %39 = vector.load %arg4[%c0_20, %c0_21] : memref<24x8xf32, #tpu.memory_space<vmem>>, vector<24x8xf32>
    %cst_22 = arith.constant dense<0.000000e+00> : vector<16x8xf32>
    %40 = tpu.matmul %38, %39, %cst_22 {dimension_numbers = #tpu.dot_dimension_numbers<[1], [0], [0], [1], [0, 0, 1, 1], [], []>} : vector<16x24xf32>, vector<24x8xf32>, vector<16x8xf32> -> vector<16x8xf32>
    %c0_23 = arith.constant 0 : index
    %c0_24 = arith.constant 0 : index
    %41 = vector.load %arg6[%c0_23, %c0_24] : memref<1x8xf32, #tpu.memory_space<vmem>>, vector<1x8xf32>
    %42 = vector.broadcast %41 : vector<1x8xf32> to vector<16x8xf32>
    %43 = arith.addf %40, %42 : vector<16x8xf32>
    %cst_25 = arith.constant 0.000000e+00 : f32
    %44 = vector.broadcast %cst_25 : f32 to vector<16x8xf32>
    %45 = arith.maximumf %43, %44 : vector<16x8xf32>
    %46 = vector.extract_strided_slice %45 {offsets = [0, 0], sizes = [8, 8], strides = [1, 1]} : vector<16x8xf32> to vector<8x8xf32>
    %c0_26 = arith.constant 0 : index
    %c0_27 = arith.constant 0 : index
    %c0_28 = arith.constant 0 : index
    %c0_29 = arith.constant 0 : index
    %47 = vector.load %arg7[%c0_26, %c0_27, %c0_28, %c0_29] : memref<1x2x8x8xf32, #tpu.memory_space<vmem>>, vector<1x1x8x8xf32>
    %48 = vector.shape_cast %47 : vector<1x1x8x8xf32> to vector<8x8xf32>
    %49 = vector.shape_cast %46 : vector<8x8xf32> to vector<1x1x8x8xf32>
    tpu.vector_store %arg7[%c0_26, %c0_27, %c0_28, %c0_29], %49 {strides = array<i32>} : memref<1x2x8x8xf32, #tpu.memory_space<vmem>>, vector<1x1x8x8xf32>,
    %50 = vector.extract_strided_slice %45 {offsets = [8, 0], sizes = [8, 8], strides = [1, 1]} : vector<16x8xf32> to vector<8x8xf32>
    %c0_30 = arith.constant 0 : index
    %c1_31 = arith.constant 1 : index
    %c0_32 = arith.constant 0 : index
    %c0_33 = arith.constant 0 : index
    %51 = vector.load %arg7[%c0_30, %c1_31, %c0_32, %c0_33] : memref<1x2x8x8xf32, #tpu.memory_space<vmem>>, vector<1x1x8x8xf32>
    %52 = vector.shape_cast %51 : vector<1x1x8x8xf32> to vector<8x8xf32>
    %53 = vector.shape_cast %50 : vector<8x8xf32> to vector<1x1x8x8xf32>
    tpu.vector_store %arg7[%c0_30, %c1_31, %c0_32, %c0_33], %53 {strides = array<i32>} : memref<1x2x8x8xf32, #tpu.memory_space<vmem>>, vector<1x1x8x8xf32>,
    return
  }
  func.func @transform_0(%arg0: i32) -> (i32, i32, i32) {
    %c0_i32 = arith.constant 0 : i32
    %c0_i32_0 = arith.constant 0 : i32
    %c0_i32_1 = arith.constant 0 : i32
    return %arg0, %c0_i32, %c0_i32_0 : i32, i32, i32
  }
  func.func @transform_1(%arg0: i32) -> (i32, i32, i32, i32) {
    %c0_i32 = arith.constant 0 : i32
    %c0_i32_0 = arith.constant 0 : i32
    %c0_i32_1 = arith.constant 0 : i32
    %c0_i32_2 = arith.constant 0 : i32
    return %arg0, %c0_i32, %c0_i32_0, %c0_i32_1 : i32, i32, i32, i32
  }
  func.func @transform_2(%arg0: i32) -> (i32, i32) {
    %c0_i32 = arith.constant 0 : i32
    %c0_i32_0 = arith.constant 0 : i32
    %c0_i32_1 = arith.constant 0 : i32
    return %c0_i32, %c0_i32_0 : i32, i32
  }
  func.func @transform_3(%arg0: i32) -> (i32, i32) {
    %c0_i32 = arith.constant 0 : i32
    %c0_i32_0 = arith.constant 0 : i32
    %c0_i32_1 = arith.constant 0 : i32
    return %c0_i32, %c0_i32_0 : i32, i32
  }
  func.func @transform_4(%arg0: i32) -> (i32, i32) {
    %c0_i32 = arith.constant 0 : i32
    %c0_i32_0 = arith.constant 0 : i32
    %c0_i32_1 = arith.constant 0 : i32
    return %c0_i32, %c0_i32_0 : i32, i32
  }
  func.func @transform_5(%arg0: i32) -> (i32, i32) {
    %c0_i32 = arith.constant 0 : i32
    %c0_i32_0 = arith.constant 0 : i32
    %c0_i32_1 = arith.constant 0 : i32
    return %c0_i32, %c0_i32_0 : i32, i32
  }
  func.func @transform_6(%arg0: i32) -> (i32, i32, i32, i32) {
    %c0_i32 = arith.constant 0 : i32
    %c0_i32_0 = arith.constant 0 : i32
    %c0_i32_1 = arith.constant 0 : i32
    %c0_i32_2 = arith.constant 0 : i32
    return %arg0, %c0_i32, %c0_i32_0, %c0_i32_1 : i32, i32, i32, i32
  }
}

</mosaic_0001>

<llo_original>
// kernel: decode_block_forward.1
$region0: #{decode_block_forward.1}
  #allocation0 [shape = 'u32[]', space=smem, size = 0x4, offset = 0x4, fixed_abs, tag = 'smem constant byte address 0x4 - core index']
  #allocation1 [shape = 'u32[144,128]{1,0:T(1,128)}', space=vmem, size = 0x12000, scoped, tag = 'internal scratch']
  %s0 = inlined_call_operand.vmem [shape: f32[2,8,4], index: 0, kind: input, shape index: {}]
  %s1 = inlined_call_operand.vmem [shape: f32[2,2,8,4], index: 1, kind: input, shape index: {}]
  %s2 = inlined_call_operand.vmem [shape: f32[24,8], index: 2, kind: input, shape index: {}]
  %s3 = inlined_call_operand.vmem [shape: f32[24,8], index: 3, kind: input, shape index: {}]
  %s4 = inlined_call_operand.vmem [shape: f32[1,8], index: 4, kind: input, shape index: {}]
  %s5 = inlined_call_operand.vmem [shape: f32[1,8], index: 5, kind: input, shape index: {}]
  %s6 = inlined_call_operand.vmem [shape: f32[2,2,8,8], index: 6, kind: output, shape index: {}]
  %s7 = sld [smem:[#allocation0]]
  $region57: #{decode_block_forward.1} parent=0
    _
  %s9 = ssub.s32 1, %s7
  %s10 = scalar_select 0, %s9, %s7
  loop: start=0, step=1, limit=4
  $region2: #{decode_block_forward.1} parent=0 // loop_pre_header
    _
  $region3: #{decode_block_forward.1} parent=0 // loop_header
    %s12 = sphi 0, %s16
    %p13 = scmp.ge.s32.totalorder %s12, 4
    %s22 = sphi 0, %s24
    %s25 = sphi 0, %s22
    %s26 = sphi 0, %s25
    %s42 = sphi 0, %s26
    %s48 = sphi 0, %s50
    %s51 = sphi 0, %s48
    %s52 = sphi 0, %s51
    %s68 = sphi 0, %s52
    %s72 = sphi 0, %s72
    %s74 = sphi 0, %s72
    %s75 = sphi 0, %s74
    %s89 = sphi 0, %s75
    %s93 = sphi 0, %s93
    %s95 = sphi 0, %s93
    %s96 = sphi 0, %s95
    %s110 = sphi 0, %s96
    %s114 = sphi 0, %s114
    %s116 = sphi 0, %s114
    %s117 = sphi 0, %s116
    %s131 = sphi 0, %s117
    %s135 = sphi 0, %s135
    %s137 = sphi 0, %s135
    %s138 = sphi 0, %s137
    %s152 = sphi 0, %s138
    %s158 = sphi 0, %s160
    %s161 = sphi 0, %s158
    %s162 = sphi 0, %s161
    %s178 = sphi 0, %s162
  $region4: #{decode_block_forward.1} parent=0 // loop_header_branch
    %15 = sbr.rel (%p13) target = $region8
  $region5: #{decode_block_forward.1} parent=0 // loop_body
    %s17 = ssub.s32 %s12, 1
    %s18 = ssub.s32 %s12, 2
    %s19 = sadd.s32 %s12, 1
    %s20 = ssub.s32 %s12, %s19
    %p21 = scmp.eq.s32.totalorder %s20, 0
    %s23 = sadd.s32 %s22, 1
    %s24 = scalar_select %p21, %s22, %s23
    %p27 = pneg %p21
    %p28 = scmp.eq.s32.totalorder %s12, 1
    %p29 = por %p27, %p28
    %p30 = scmp.ne.s32.totalorder %s22, %s25
    %p31 = scmp.eq.s32.totalorder %s12, 0
    %p32 = por %p30, %p31
    %p33 = scmp.ne.s32.totalorder %s22, %s25
    %p34 = scmp.eq.s32.totalorder %s17, 1
    %p35 = por %p33, %p34
    %p36 = scmp.ne.s32.totalorder %s25, %s26
    %p37 = scmp.eq.s32.totalorder %s17, 0
    %p38 = por %p36, %p37
    %p39 = scmp.ne.s32.totalorder %s25, %s26
    %p40 = scmp.eq.s32.totalorder %s18, 1
    %p41 = por %p39, %p40
    %p43 = scmp.ne.s32.totalorder %s26, %s42
    %p44 = scmp.eq.s32.totalorder %s18, 0
    %p45 = por %p43, %p44
    %s46 = ssub.s32 %s12, %s19
    %p47 = scmp.eq.s32.totalorder %s46, 0
    %s49 = sadd.s32 %s48, 1
    %s50 = scalar_select %p47, %s48, %s49
    %p53 = pneg %p47
    %p54 = scmp.eq.s32.totalorder %s12, 1
    %p55 = por %p53, %p54
    %p56 = scmp.ne.s32.totalorder %s48, %s51
    %p57 = scmp.eq.s32.totalorder %s12, 0
    %p58 = por %p56, %p57
    %p59 = scmp.ne.s32.totalorder %s48, %s51
    %p60 = scmp.eq.s32.totalorder %s17, 1
    %p61 = por %p59, %p60
    %p62 = scmp.ne.s32.totalorder %s51, %s52
    %p63 = scmp.eq.s32.totalorder %s17, 0
    %p64 = por %p62, %p63
    %p65 = scmp.ne.s32.totalorder %s51, %s52
    %p66 = scmp.eq.s32.totalorder %s18, 1
    %p67 = por %p65, %p66
    %p69 = scmp.ne.s32.totalorder %s52, %s68
    %p70 = scmp.eq.s32.totalorder %s18, 0
    %p71 = por %p69, %p70
    %s73 = sadd.s32 %s72, 1
    %p76 = scmp.eq.s32.totalorder %s12, 1
    %p77 = scmp.ne.s32.totalorder %s72, %s74
    %p78 = scmp.eq.s32.totalorder %s12, 0
    %p79 = por %p77, %p78
    %p80 = scmp.ne.s32.totalorder %s72, %s74
    %p81 = scmp.eq.s32.totalorder %s17, 1
    %p82 = por %p80, %p81
    %p83 = scmp.ne.s32.totalorder %s74, %s75
    %p84 = scmp.eq.s32.totalorder %s17, 0
    %p85 = por %p83, %p84
    %p86 = scmp.ne.s32.totalorder %s74, %s75
    %p87 = scmp.eq.s32.totalorder %s18, 1
    %p88 = por %p86, %p87
    %p90 = scmp.ne.s32.totalorder %s75, %s89
    %p91 = scmp.eq.s32.totalorder %s18, 0
    %p92 = por %p90, %p91
    %s94 = sadd.s32 %s93, 1
    %p97 = scmp.eq.s32.totalorder %s12, 1
    %p98 = scmp.ne.s32.totalorder %s93, %s95
    %p99 = scmp.eq.s32.totalorder %s12, 0
    %p100 = por %p98, %p99
    %p101 = scmp.ne.s32.totalorder %s93, %s95
    %p102 = scmp.eq.s32.totalorder %s17, 1
    %p103 = por %p101, %p102
    %p104 = scmp.ne.s32.totalorder %s95, %s96
    %p105 = scmp.eq.s32.totalorder %s17, 0
    %p106 = por %p104, %p105
    %p107 = scmp.ne.s32.totalorder %s95, %s96
    %p108 = scmp.eq.s32.totalorder %s18, 1
    %p109 = por %p107, %p108
    %p111 = scmp.ne.s32.totalorder %s96, %s110
    %p112 = scmp.eq.s32.totalorder %s18, 0
    %p113 = por %p111, %p112
    %s115 = sadd.s32 %s114, 1
    %p118 = scmp.eq.s32.totalorder %s12, 1
    %p119 = scmp.ne.s32.totalorder %s114, %s116
    %p120 = scmp.eq.s32.totalorder %s12, 0
    %p121 = por %p119, %p120
    %p122 = scmp.ne.s32.totalorder %s114, %s116
    %p123 = scmp.eq.s32.totalorder %s17, 1
    %p124 = por %p122, %p123
    %p125 = scmp.ne.s32.totalorder %s116, %s117
    %p126 = scmp.eq.s32.totalorder %s17, 0
    %p127 = por %p125, %p126
    %p128 = scmp.ne.s32.totalorder %s116, %s117
    %p129 = scmp.eq.s32.totalorder %s18, 1
    %p130 = por %p128, %p129
    %p132 = scmp.ne.s32.totalorder %s117, %s131
    %p133 = scmp.eq.s32.totalorder %s18, 0
    %p134 = por %p132, %p133
    %s136 = sadd.s32 %s135, 1
    %p139 = scmp.eq.s32.totalorder %s12, 1
    %p140 = scmp.ne.s32.totalorder %s135, %s137
    %p141 = scmp.eq.s32.totalorder %s12, 0
    %p142 = por %p140, %p141
    %p143 = scmp.ne.s32.totalorder %s135, %s137
    %p144 = scmp.eq.s32.totalorder %s17, 1
    %p145 = por %p143, %p144
    %p146 = scmp.ne.s32.totalorder %s137, %s138
    %p147 = scmp.eq.s32.totalorder %s17, 0
    %p148 = por %p146, %p147
    %p149 = scmp.ne.s32.totalorder %s137, %s138
    %p150 = scmp.eq.s32.totalorder %s18, 1
    %p151 = por %p149, %p150
    %p153 = scmp.ne.s32.totalorder %s138, %s152
    %p154 = scmp.eq.s32.totalorder %s18, 0
    %p155 = por %p153, %p154
    %s156 = ssub.s32 %s12, %s19
    %p157 = scmp.eq.s32.totalorder %s156, 0
    %s159 = sadd.s32 %s158, 1
    %s160 = scalar_select %p157, %s158, %s159
    %p163 = pneg %p157
    %p164 = scmp.eq.s32.totalorder %s12, 1
    %p165 = por %p163, %p164
    %p166 = scmp.ne.s32.totalorder %s158, %s161
    %p167 = scmp.eq.s32.totalorder %s12, 0
    %p168 = por %p166, %p167
    %p169 = scmp.ne.s32.totalorder %s158, %s161
    %p170 = scmp.eq.s32.totalorder %s17, 1
    %p171 = por %p169, %p170
    %p172 = scmp.ne.s32.totalorder %s161, %s162
    %p173 = scmp.eq.s32.totalorder %s17, 0
    %p174 = por %p172, %p173
    %p175 = scmp.ne.s32.totalorder %s161, %s162
    %p176 = scmp.eq.s32.totalorder %s18, 1
    %p177 = por %p175, %p176
    %p179 = scmp.ne.s32.totalorder %s162, %s178
    %p180 = scmp.eq.s32.totalorder %s18, 0
    %p181 = por %p179, %p180
    %p182 = scmp.le.s32.totalorder 1, %s12
    %p183 = scmp.lt.s32.totalorder %s12, 3
    %p184 = pnand %p182, %p183
    %p185 = pneg %p184
    // Predicated region
    $region9: #{decode_block_forward.1} parent=5 // pred_check
      _
    $region10: #{decode_block_forward.1} parent=5 // pred_check_branch
      %187 = sbr.rel (%p184) target = $region12
    $region11: #{decode_block_forward.1} parent=5 // pred_region
      %s188 = ssub.s32 %s12, 1
      // Predicated region
      $region13: #{decode_block_forward.1} parent=11 // pred_check
        %p189 = pneg %p85
      $region14: #{decode_block_forward.1} parent=11 // pred_check_branch
        %191 = sbr.rel (%p189) target = $region16
      $region15: #{decode_block_forward.1} parent=11 // pred_region
        _
      $region16: #{decode_block_forward.1} parent=11 // pred_fallthru
        _
      // Predicated region
      $region17: #{decode_block_forward.1} parent=11 // pred_check
        %p192 = pneg %p106
      $region18: #{decode_block_forward.1} parent=11 // pred_check_branch
        %194 = sbr.rel (%p192) target = $region20
      $region19: #{decode_block_forward.1} parent=11 // pred_region
        _
      $region20: #{decode_block_forward.1} parent=11 // pred_fallthru
        _
      // Predicated region
      $region21: #{decode_block_forward.1} parent=11 // pred_check
        %p195 = pneg %p127
      $region22: #{decode_block_forward.1} parent=11 // pred_check_branch
        %197 = sbr.rel (%p195) target = $region24
      $region23: #{decode_block_forward.1} parent=11 // pred_region
        _
      $region24: #{decode_block_forward.1} parent=11 // pred_fallthru
        _
      // Predicated region
      $region25: #{decode_block_forward.1} parent=11 // pred_check
        %p198 = pneg %p148
      $region26: #{decode_block_forward.1} parent=11 // pred_check_branch
        %200 = sbr.rel (%p198) target = $region28
      $region27: #{decode_block_forward.1} parent=11 // pred_region
        _
      $region28: #{decode_block_forward.1} parent=11 // pred_fallthru
        _
    $region12: #{decode_block_forward.1} parent=5 // pred_fallthru
      _
    %p201 = scmp.lt.s32.totalorder %s12, 2
    // Predicated region
    $region29: #{decode_block_forward.1} parent=5 // pred_check
      %p202 = pneg %p201
    $region30: #{decode_block_forward.1} parent=5 // pred_check_branch
      %204 = sbr.rel (%p202) target = $region32
    $region31: #{decode_block_forward.1} parent=5 // pred_region
      // Predicated region
      $region33: #{decode_block_forward.1} parent=31 // pred_check
        %p205 = pneg %p32
      $region34: #{decode_block_forward.1} parent=31 // pred_check_branch
        %207 = sbr.rel (%p205) target = $region36
      $region35: #{decode_block_forward.1} parent=31 // pred_region
        %p208 = scmp.lt.s32.totalorder %s12, 1
        %s209 = scalar_select %p208, %s12, 1
        %s210 = smul.addr %s209, 8
        %s211 = scalar_lea.vmem %s0, %s210
      $region36: #{decode_block_forward.1} parent=31 // pred_fallthru
        _
      // Predicated region
      $region37: #{decode_block_forward.1} parent=31 // pred_check
        %p212 = pneg %p58
      $region38: #{decode_block_forward.1} parent=31 // pred_check_branch
        %214 = sbr.rel (%p212) target = $region40
      $region39: #{decode_block_forward.1} parent=31 // pred_region
        %p215 = scmp.lt.s32.totalorder %s12, 1
        %s216 = scalar_select %p215, %s12, 1
        %s217 = smul.addr %s216, 2
        %s218 = smul.addr %s217, 8
        %s219 = scalar_lea.vmem %s1, %s218
      $region40: #{decode_block_forward.1} parent=31 // pred_fallthru
        _
    $region32: #{decode_block_forward.1} parent=5 // pred_fallthru
      _
    %p220 = scmp.le.s32.totalorder 1, %s12
    %p221 = scmp.lt.s32.totalorder %s12, 3
    %p222 = pnand %p220, %p221
    %p223 = pneg %p222
    // Predicated region
    $region41: #{decode_block_forward.1} parent=5 // pred_check
      _
    $region42: #{decode_block_forward.1} parent=5 // pred_check_branch
      %225 = sbr.rel (%p222) target = $region44
    $region43: #{decode_block_forward.1} parent=5 // pred_region
      %s226 = ssub.s32 %s12, 1
      %p227 = scmp.lt.s32.totalorder %s17, 1
      %s228 = scalar_select %p227, %s17, 1
      %s229 = smul.addr %s228, 8
      %s230 = scalar_lea.vmem %s0, %s229
      %p231 = pneg %p38
      %p232 = pneg %p35
      %p233 = scmp.lt.s32.totalorder %s17, 1
      %s234 = scalar_select %p233, %s17, 1
      %s235 = smul.addr %s234, 2
      %s236 = smul.addr %s235, 8
      %s237 = scalar_lea.vmem %s1, %s236
      %p238 = pneg %p64
      %p239 = pneg %p61
      %p240 = pneg %p85
      %p241 = pneg %p82
      %p242 = pneg %p106
      %p243 = pneg %p103
      %p244 = pneg %p127
      %p245 = pneg %p124
      %p246 = pneg %p148
      %p247 = pneg %p145
      %p248 = pneg %p174
      %p249 = pneg %p171
      %p250 = scmp.lt.s32.totalorder %s17, 1
      %s251 = scalar_select %p250, %s17, 1
      %s252 = smul.addr %s251, 2
      %s253 = smul.addr %s252, 8
      %s254 = scalar_lea.vmem %s6, %s253
      %p255 = scmp.lt.s32.totalorder %s17, 1
      %s256 = scalar_select %p255, %s17, 1
      %s257 = smul.addr %s256, 8
      %s258 = scalar_lea.vmem %s0, %s257
      %p259 = scmp.lt.s32.totalorder %s17, 1
      %s260 = scalar_select %p259, %s17, 1
      %s261 = smul.addr %s260, 2
      %s262 = smul.addr %s261, 8
      %s263 = scalar_lea.vmem %s1, %s262
      %p264 = scmp.lt.s32.totalorder %s17, 1
      %s265 = scalar_select %p264, %s17, 1
      %s266 = smul.addr %s265, 2
      %s267 = smul.addr %s266, 8
      %s268 = scalar_lea.vmem %s6, %s267
      %v269 = vld [vmem:[%s258] sm:$0xff]
      %v271 = vrot.slane %v269, 7
      %vm273 = vcmask 1040384
      %v274 = vsel %vm273, 0.0, %v271
      %v275 = vrot.slane %v269, 1
      %vm277 = vcmask 1046528
      %v278 = vsel %vm277, %v275, 0.0
      %v279 = vld [vmem:[%s263] sm:$0xff]
      %s280 = scalar_lea.vmem %s263, 8
      %v281 = vld [vmem:[%s280] sm:$0xff]
      %v283 = vrot.slane %v281, 7
      %v285 = vsel %vm273, 0.0, %v283
      %287 = vrot.lane.b32.xlu0 %v285, 4
      %v288 = vpop.permute.xlu0 %287
      %290 = vrot.lane.b32.xlu0 %v269, 8
      %v291 = vpop.permute.xlu0 %290
      %294 = vrot.lane.b32.xlu0 %v279, 12
      %v295 = vpop.permute.xlu0 %294
      %297 = vrot.lane.b32.xlu0 %v269, 16
      %v298 = vpop.permute.xlu0 %297
      %300 = vrot.lane.b32.xlu0 %v281, 20
      %v301 = vpop.permute.xlu0 %300
      %vm303 = vcmask 31744
      %v304 = vsel %vm303, %v274, %v288
      %vm305 = vcmask 64512
      %v306 = vsel %vm305, %v304, %v291
      %vm307 = vcmask 97280
      %v308 = vsel %vm307, %v306, %v295
      %vm309 = vcmask 130048
      %v310 = vsel %vm309, %v308, %v298
      %vm311 = vcmask 162816
      %v312 = vsel %vm311, %v310, %v301
      %v313 = vrot.slane %v279, 1
      %v315 = vsel %vm277, %v313, 0.0
      %316 = vrot.lane.b32.xlu0 %v279, 4
      %v317 = vpop.permute.xlu0 %316
      %319 = vrot.lane.b32.xlu0 %v281, 12
      %v320 = vpop.permute.xlu0 %319
      %323 = vrot.lane.b32.xlu0 %v278, 16
      %v324 = vpop.permute.xlu0 %323
      %327 = vrot.lane.b32.xlu0 %v315, 20
      %v328 = vpop.permute.xlu0 %327
      %v330 = vsel %vm303, %v269, %v317
      %v331 = vsel %vm305, %v330, %v291
      %v332 = vsel %vm307, %v331, %v320
      %v333 = vsel %vm309, %v332, %v324
      %v334 = vsel %vm311, %v333, %v328
      %v335 = vld [vmem:[%s2] sm:$0xff]
      %v336 = vld [vmem:[%s2 + $0x8] sm:$0xff]
      %v337 = vld [vmem:[%s2 + $0x10] sm:$0xff]
      %v338 = vld [vmem:[%s4] sm:$0x1]
      %v340 = vlaneseq
      %v341 = vshrl.u32 %v340, 7
      %v342 = vsub.s32 0, %v341
      %v343 = vrot.slane %v338, %v342
      %vm345 = vcmask 195584
      %v347 = vsel %vm345, %v312, 0
      %v350 = vsel %vm345, %v334, 0
      %352 = vmatprep.subr.mxu0 0.0
      %353 = vmatpush1.msra.mxu0 %v335
      %354 = vmatprep.subr.mxu0 0.0
      %355 = vmatpush1.msra.mxu0 %v336
      %356 = vmatprep.subr.mxu0 0.0
      %357 = vmatpush1.msra.mxu0 %v337
      %358 = vmatprep.subr.mxu0 0.0
      %359 = vmatpush1.msra.mxu0 0.0
      %360 = vmatprep.subr.mxu0 0.0
      %361 = vmatpush1.msra.mxu0 0.0
      %362 = vmatprep.subr.mxu0 0.0
      %363 = vmatpush1.msra.mxu0 0.0
      %364 = vmatprep.subr.mxu0 0.0
      %365 = vmatpush1.msra.mxu0 0.0
      %366 = vmatprep.subr.mxu0 0.0
      %367 = vmatpush1.msra.mxu0 0.0
      %368 = vmatprep.subr.mxu0 0.0
      %369 = vmatpush1.msra.mxu0 0.0
      %370 = vmatprep.subr.mxu0 0.0
      %371 = vmatpush1.msra.mxu0 0.0
      %372 = vmatprep.subr.mxu0 0.0
      %373 = vmatpush1.msra.mxu0 0.0
      %374 = vmatprep.subr.mxu0 0.0
      %375 = vmatpush1.msra.mxu0 0.0
      %376 = vmatprep.subr.mxu0 0.0
      %377 = vmatpush1.msra.mxu0 0.0
      %378 = vmatprep.subr.mxu0 0.0
      %379 = vmatpush1.msra.mxu0 0.0
      %380 = vmatprep.subr.mxu0 0.0
      %381 = vmatpush1.msra.mxu0 0.0
      %382 = vmatprep.subr.mxu0 0.0
      %383 = vmatpush1.msra.mxu0 0.0
      %384 = vmatprep.subr.mxu0 0.0
      %385 = vmatpush1.msra.mxu0 0.0
      %386 = vmatprep.subr.mxu0 0.0
      %387 = vmatpush1.msra.mxu0 0.0
      %388 = vmatprep.subr.mxu0 0.0
      %389 = vmatpush1.msra.mxu0 0.0
      %390 = vmatprep.subr.mxu0 0.0
      %391 = vmatpush1.msra.mxu0 0.0
      %392 = vmatprep.subr.mxu0 0.0
      %393 = vmatpush1.msra.mxu0 0.0
      %394 = vmatprep.subr.mxu0 0.0
      %395 = vmatpush1.msra.mxu0 0.0
      %396 = vmatprep.subr.mxu0 0.0
      %397 = vmatpush1.msra.mxu0 0.0
      %398 = vmatprep.subr.mxu0 0.0
      %399 = vmatpush1.msra.mxu0 0.0
      %400 = vmatprep.subr.mxu0 0.0
      %401 = vmatpush1.msra.mxu0 0.0
      %402 = vmatprep.subr.mxu0 0.0
      %403 = vmatpush1.msra.mxu0 0.0
      %404 = vmatprep.subr.mxu0 0.0
      %405 = vmatpush1.msra.mxu0 0.0
      %406 = vmatprep.subr.mxu0 0.0
      %407 = vmatpush1.msra.mxu0 0.0
      %408 = vmatprep.subr.mxu0 0.0
      %409 = vmatpush1.msra.mxu0 0.0
      %410 = vmatprep.subr.mxu0 0.0
      %411 = vmatpush1.msra.mxu0 0.0
      %412 = vmatprep.subr.mxu0 0.0
      %413 = vmatpush1.msra.mxu0 0.0
      %414 = vmatprep.subr.mxu0 0.0
      %415 = vmatpush1.msra.mxu0 0.0
      %416 = vmatprep.mubr.f32.mxu0 0.0
      %417 = vmatmul.mubr.f32.gmra.mrb[0].mxu0 %v347
      %v418 = vpop.f32.mrb[0].mxu0
      %v419 = vadd.f32 %v343, %v418
      %v420 = vpop.f32.mrb[0].mxu0
      %421 = vmatprep.mubr.f32.mxu0 0.0
      %422 = vmatmul.mubr.f32.gmra.mrb[0].mxu0 %v350
      %v423 = vpop.f32.mrb[0].mxu0
      %v424 = vadd.f32 %v343, %v423
      %v425 = vpop.f32.mrb[0].mxu0
      %426 = vdwg.mxu0
      %v427 = vmax.f32 %v419, 0.0
      %v428 = vmax.f32 %v424, 0.0
      %v430 = vrot.slane %v428, 7
      %v432 = vsel %vm273, 0.0, %v430
      %434 = vrot.lane.b32.xlu0 %v427, 8
      %v435 = vpop.permute.xlu0 %434
      %437 = vrot.lane.b32.xlu0 %v428, 16
      %v438 = vpop.permute.xlu0 %437
      %v440 = vsel %vm305, %v432, %v435
      %v441 = vsel %vm309, %v440, %v438
      %v442 = vrot.slane %v427, 1
      %v444 = vsel %vm277, %v442, 0.0
      %445 = vrot.lane.b32.xlu0 %v428, 8
      %v446 = vpop.permute.xlu0 %445
      %449 = vrot.lane.b32.xlu0 %v444, 16
      %v450 = vpop.permute.xlu0 %449
      %v452 = vsel %vm305, %v427, %v446
      %v453 = vsel %vm309, %v452, %v450
      %v454 = vld [vmem:[%s3] sm:$0xff]
      %v455 = vld [vmem:[%s3 + $0x8] sm:$0xff]
      %v456 = vld [vmem:[%s3 + $0x10] sm:$0xff]
      %v457 = vld [vmem:[%s5] sm:$0x1]
      %v459 = vlaneseq
      %v460 = vshrl.u32 %v459, 7
      %v461 = vsub.s32 0, %v460
      %v462 = vrot.slane %v457, %v461
      %v465 = vsel %vm345, %v441, 0
      %v468 = vsel %vm345, %v453, 0
      %470 = vmatprep.subr.mxu0 0.0
      %471 = vmatpush1.msra.mxu0 %v454
      %472 = vmatprep.subr.mxu0 0.0
      %473 = vmatpush1.msra.mxu0 %v455
      %474 = vmatprep.subr.mxu0 0.0
      %475 = vmatpush1.msra.mxu0 %v456
      %476 = vmatprep.subr.mxu0 0.0
      %477 = vmatpush1.msra.mxu0 0.0
      %478 = vmatprep.subr.mxu0 0.0
      %479 = vmatpush1.msra.mxu0 0.0
      %480 = vmatprep.subr.mxu0 0.0
      %481 = vmatpush1.msra.mxu0 0.0
      %482 = vmatprep.subr.mxu0 0.0
      %483 = vmatpush1.msra.mxu0 0.0
      %484 = vmatprep.subr.mxu0 0.0
      %485 = vmatpush1.msra.mxu0 0.0
      %486 = vmatprep.subr.mxu0 0.0
      %487 = vmatpush1.msra.mxu0 0.0
      %488 = vmatprep.subr.mxu0 0.0
      %489 = vmatpush1.msra.mxu0 0.0
      %490 = vmatprep.subr.mxu0 0.0
      %491 = vmatpush1.msra.mxu0 0.0
      %492 = vmatprep.subr.mxu0 0.0
      %493 = vmatpush1.msra.mxu0 0.0
      %494 = vmatprep.subr.mxu0 0.0
      %495 = vmatpush1.msra.mxu0 0.0
      %496 = vmatprep.subr.mxu0 0.0
      %497 = vmatpush1.msra.mxu0 0.0
      %498 = vmatprep.subr.mxu0 0.0
      %499 = vmatpush1.msra.mxu0 0.0
      %500 = vmatprep.subr.mxu0 0.0
      %501 = vmatpush1.msra.mxu0 0.0
      %502 = vmatprep.subr.mxu0 0.0
      %503 = vmatpush1.msra.mxu0 0.0
      %504 = vmatprep.subr.mxu0 0.0
      %505 = vmatpush1.msra.mxu0 0.0
      %506 = vmatprep.subr.mxu0 0.0
      %507 = vmatpush1.msra.mxu0 0.0
      %508 = vmatprep.subr.mxu0 0.0
      %509 = vmatpush1.msra.mxu0 0.0
      %510 = vmatprep.subr.mxu0 0.0
      %511 = vmatpush1.msra.mxu0 0.0
      %512 = vmatprep.subr.mxu0 0.0
      %513 = vmatpush1.msra.mxu0 0.0
      %514 = vmatprep.subr.mxu0 0.0
      %515 = vmatpush1.msra.mxu0 0.0
      %516 = vmatprep.subr.mxu0 0.0
      %517 = vmatpush1.msra.mxu0 0.0
      %518 = vmatprep.subr.mxu0 0.0
      %519 = vmatpush1.msra.mxu0 0.0
      %520 = vmatprep.subr.mxu0 0.0
      %521 = vmatpush1.msra.mxu0 0.0
      %522 = vmatprep.subr.mxu0 0.0
      %523 = vmatpush1.msra.mxu0 0.0
      %524 = vmatprep.subr.mxu0 0.0
      %525 = vmatpush1.msra.mxu0 0.0
      %526 = vmatprep.subr.mxu0 0.0
      %527 = vmatpush1.msra.mxu0 0.0
      %528 = vmatprep.subr.mxu0 0.0
      %529 = vmatpush1.msra.mxu0 0.0
      %530 = vmatprep.subr.mxu0 0.0
      %531 = vmatpush1.msra.mxu0 0.0
      %532 = vmatprep.subr.mxu0 0.0
      %533 = vmatpush1.msra.mxu0 0.0
      %534 = vmatprep.mubr.f32.mxu0 0.0
      %535 = vmatmul.mubr.f32.gmra.mrb[0].mxu0 %v465
      %v536 = vpop.f32.mrb[0].mxu0
      %v537 = vadd.f32 %v462, %v536
      %v538 = vpop.f32.mrb[0].mxu0
      %539 = vmatprep.mubr.f32.mxu0 0.0
      %540 = vmatmul.mubr.f32.gmra.mrb[0].mxu0 %v468
      %v541 = vpop.f32.mrb[0].mxu0
      %v542 = vadd.f32 %v462, %v541
      %v543 = vpop.f32.mrb[0].mxu0
      %544 = vdwg.mxu0
      %v545 = vmax.f32 %v537, 0.0
      %v546 = vmax.f32 %v542, 0.0
      %547 = vst.msk [vmem:[%s268] sm:$0xff] %vm305, %v545
      %s548 = scalar_lea.vmem %s268, 8
      %549 = vst.msk [vmem:[%s548] sm:$0xff] %vm305, %v546
      %p550 = scmp.lt.s32.totalorder %s17, 1
      %s551 = scalar_select %p550, %s17, 1
      %s552 = smul.addr %s551, 2
      %s553 = smul.addr %s552, 8
      %s554 = scalar_lea.vmem %s6, %s553
      // Predicated region
      $region45: #{decode_block_forward.1} parent=43 // pred_check
        %p555 = pneg %p171
      $region46: #{decode_block_forward.1} parent=43 // pred_check_branch
        %557 = sbr.rel (%p555) target = $region48
      $region47: #{decode_block_forward.1} parent=43 // pred_region
        _
      $region48: #{decode_block_forward.1} parent=43 // pred_fallthru
        _
    $region44: #{decode_block_forward.1} parent=5 // pred_fallthru
      _
    %p558 = scmp.le.s32.totalorder 2, %s12
    // Predicated region
    $region49: #{decode_block_forward.1} parent=5 // pred_check
      %p559 = pneg %p558
    $region50: #{decode_block_forward.1} parent=5 // pred_check_branch
      %561 = sbr.rel (%p559) target = $region52
    $region51: #{decode_block_forward.1} parent=5 // pred_region
      %s562 = ssub.s32 %s12, 2
      // Predicated region
      $region53: #{decode_block_forward.1} parent=51 // pred_check
        %p563 = pneg %p177
      $region54: #{decode_block_forward.1} parent=51 // pred_check_branch
        %565 = sbr.rel (%p563) target = $region56
      $region55: #{decode_block_forward.1} parent=51 // pred_region
        %p566 = scmp.lt.s32.totalorder %s18, 1
        %s567 = scalar_select %p566, %s18, 1
        %s568 = smul.addr %s567, 2
        %s569 = smul.addr %s568, 8
        %s570 = scalar_lea.vmem %s6, %s569
      $region56: #{decode_block_forward.1} parent=51 // pred_fallthru
        _
    $region52: #{decode_block_forward.1} parent=5 // pred_fallthru
      _
  $region6: #{decode_block_forward.1} parent=0 // loop_footer
    %s16 = sadd.s32 1, %s12
  $region7: #{decode_block_forward.1} parent=0 // loop_footer_branch
    %11 = sbr.rel target = $region3
  $region8: #{decode_block_forward.1} parent=0 // loop_exit
    _

</llo_original>
